<compile_context>
chip_gen: v5e
topology: v5e:2x2
jax: 0.10.0
libtpu: 0.0.40
codegen_flags: <defaults>
</compile_context>

<pallas_src>
import jax
import jax.numpy as jnp
from jax.experimental import pallas as pl
from jax.experimental.pallas import tpu as pltpu


def _round_up(a, b):
    return (a + b - 1) // b * b


def _vmem_budget_bytes():
    """Per-core VMEM budget by TPU generation (conservative for unknown/v7x)."""
    kind = ""
    try:
        kind = jax.devices()[0].device_kind.lower()
    except Exception:
        pass
    if any(tag in kind for tag in ("v4", "v5", "v6")):
        return 80 << 20, True      # 128 MiB physical VMEM: big tiles allowed
    return 44 << 20, False         # v7x-like: 64 MiB physical per TensorCore


def _choose_tiles(NOp, Lp, KC, cbytes, obytes, budget, big_vmem):
    """Weight-stationary tiling: pick (TN, TL) minimizing approx HBM traffic."""
    tl_caps = (2048, 1024, 512, 256, 128) if big_vmem else (512, 256, 128)
    tl_cands = [c for c in tl_caps if c <= Lp and Lp % c == 0]
    tn_cands = sorted({c for c in (NOp, 2048, 1024, 512, 256, 128)
                       if c <= NOp and NOp % c == 0}, reverse=True)

    def blk_bytes(tn, tl):
        # double-buffered weight / x / bias input blocks + output block
        return 2 * (tn * KC * cbytes + KC * tl * cbytes + tn * 4
                    + tn * tl * obytes)

    x_slab = KC * Lp * cbytes            # per-batch im2col bytes
    best = None
    for tn in tn_cands:
        for tl in tl_cands:
            if blk_bytes(tn, tl) + (4 << 20) > budget:
                continue
            o_tiles = NOp // tn
            steps = o_tiles * (Lp // tl)
            # re-read the x slab once per o tile + ~0.35us fixed per grid step
            score = o_tiles * x_slab + steps * (384 << 10)
            if best is None or score < best[0]:
                best = (score, tn, tl)
    if best is None:                     # nothing fits budget: smallest blocks
        return tn_cands[-1], tl_cands[-1]
    return best[1], best[2]


def _conv_mm_kernel(w_ref, x_ref, b_ref, o_ref):
    # w_ref : (TN, KC)     weight tile (n_out x flattened taps*channels)
    # x_ref : (1, KC, TL)  im2col input tile (contraction x length)
    # b_ref : (TN, 1)      f32 bias
    # o_ref : (1, TN, TL)  output tile, NCL layout
    acc = jnp.dot(w_ref[...], x_ref[0], preferred_element_type=jnp.float32)
    o_ref[0] = (acc + b_ref[...]).astype(o_ref.dtype)


def weight_share_conv1d(x, hid, weight1, weight2, bias2, dilation,
                        compute_dtype=jnp.bfloat16, out_dtype=None):
    """Forward pass of WeightShareConv1d.

    x      : (N, input_dim + hidden_dim, L)  NCL, same as PyTorch
    hid    : (N, hidden_dim, 1)
    weight1: (n_out, input_dim, k)
    weight2: (n_out, hidden_dim, k)
    bias2  : (n_out,)
    returns: (N, n_out, L)
    """
    n_out, input_dim, k = weight1.shape
    hidden_dim = weight2.shape[1]
    N, C, L = x.shape
    assert C == input_dim + hidden_dim
    padding = (k - 1) * dilation
    out_dtype = x.dtype if out_dtype is None else out_dtype

    # ---- padded / tiled sizes: lane- & sublane-dense blocks -----------------
    Cp = _round_up(C, 128)
    KC = k * Cp
    NOp = _round_up(n_out, 128)
    Lp = _round_up(L, 128)

    cbytes = jnp.dtype(compute_dtype).itemsize
    obytes = jnp.dtype(out_dtype).itemsize
    budget, big_vmem = _vmem_budget_bytes()
    TN, TL = _choose_tiles(NOp, Lp, KC, cbytes, obytes, budget, big_vmem)
    if not big_vmem:
        # v7x-like (2 TensorCores/chip): keep >= 2 parallel grid tiles.
        while N * (NOp // TN) * (Lp // TL) < 2 and TL > 128:
            TL //= 2

    # ---- input prep (all NCL; pads/concats stay outside the kernel) ---------
    # left halo columns: zeros for input channels, hid for hidden channels
    left = jnp.concatenate(
        [jnp.zeros((N, input_dim, padding), x.dtype),
         jnp.broadcast_to(hid, (N, hidden_dim, padding)).astype(x.dtype)],
        axis=1)
    xp = jnp.concatenate([left, x], axis=2)                    # (N, C, padding+L)
    xp = jnp.pad(xp, ((0, 0), (0, Cp - C), (0, Lp - L)))       # (N, Cp, padding+Lp)
    # im2col over the k dilated taps -> one deep-contraction matmul per tile.
    # TODO(synk): if profiling on v5e shows this slab materializing as extra HBM
    # copies, switch to k per-tap BlockSpecs over xp (element-offset index maps).
    xcol = jnp.concatenate(
        [xp[:, :, j * dilation: j * dilation + Lp] for j in range(k)],
        axis=1).astype(compute_dtype)                          # (N, k*Cp, Lp)

    # conv(x1, w1) + conv(z1, w2, b2) == [x1;z1] conv [w1;w2] + b2
    w = jnp.concatenate([weight1, weight2], axis=1)            # (n_out, C, k)
    w = jnp.pad(w, ((0, NOp - n_out), (0, Cp - C), (0, 0)))    # (NOp, Cp, k)
    w2d = jnp.transpose(w, (0, 2, 1)).reshape(NOp, KC).astype(compute_dtype)
    b = jnp.pad(bias2, (0, NOp - n_out)).reshape(NOp, 1).astype(jnp.float32)

    grid = (N, NOp // TN, Lp // TL)

    blk_bytes = 2 * (TN * KC * cbytes + KC * TL * cbytes + TN * 4
                     + TN * TL * obytes)
    cap = (100 << 20) if big_vmem else (48 << 20)
    vmem_limit = int(min(cap, max(blk_bytes + (4 << 20), 16 << 20)))

    o_tiles = NOp // TN
    w_reads = N if o_tiles > 1 else 1
    cost = pl.CostEstimate(
        flops=2 * N * NOp * Lp * KC,
        transcendentals=0,
        bytes_accessed=int(o_tiles * N * KC * Lp * cbytes
                           + w_reads * NOp * KC * cbytes
                           + NOp * 4
                           + N * NOp * Lp * obytes))

    out = pl.pallas_call(
        _conv_mm_kernel,
        out_shape=jax.ShapeDtypeStruct((N, NOp, Lp), out_dtype),
        grid=grid,
        in_specs=[
            pl.BlockSpec((TN, KC), lambda n, o, l: (o, 0)),
            pl.BlockSpec((1, KC, TL), lambda n, o, l: (n, 0, l)),
            pl.BlockSpec((TN, 1), lambda n, o, l: (o, 0)),
        ],
        out_specs=pl.BlockSpec((1, TN, TL), lambda n, o, l: (n, o, l)),
        compiler_params=pltpu.CompilerParams(
            dimension_semantics=("parallel", "parallel", "parallel"),
            vmem_limit_bytes=vmem_limit),
        cost_estimate=cost,
    )(w2d, xcol, b)

    # TODO(synk): VariationalHidDropout with dropouth=0.0 is identity; non-zero
    # training-mode hidden dropout (and the per-(dilation, device) conv cache,
    # a stateful memoization that is a functional no-op) are not implemented.
    return out[:, :n_out, :L]


def _reference(x, hid, w1, w2, b2, dilation):
    """Pure-JAX reference mirroring the PyTorch forward exactly."""
    n_out, input_dim, k = w1.shape
    hidden_dim = w2.shape[1]
    N, C, L = x.shape
    padding = (k - 1) * dilation
    x1 = jnp.pad(x[:, :input_dim, :], ((0, 0), (0, 0), (padding, 0)))
    z1 = jnp.concatenate(
        [jnp.broadcast_to(hid, (N, hidden_dim, padding)).astype(x.dtype),
         x[:, input_dim:, :]], axis=2)
    dn = ('NCH', 'OIH', 'NCH')
    out1 = jax.lax.conv_general_dilated(
        x1, w1, window_strides=(1,), padding='VALID',
        rhs_dilation=(dilation,), dimension_numbers=dn)
    out2 = jax.lax.conv_general_dilated(
        z1, w2, window_strides=(1,), padding='VALID',
        rhs_dilation=(dilation,), dimension_numbers=dn)
    return out1 + out2 + b2.reshape(1, n_out, 1)


if __name__ == "__main__":
    # Small shapes consistent with the module.
    N, input_dim, hidden_dim, n_out, k, L, dilation = 2, 4, 8, 16, 2, 16, 2

    key = jax.random.PRNGKey(0)
    kx, kh, kw1, kw2, kb = jax.random.split(key, 5)

    # Deterministic parameter init matching init_weights(): normal(0, 0.01).
    bound = 0.01
    weight1 = bound * jax.random.normal(kw1, (n_out, input_dim, k), jnp.float32)
    weight2 = bound * jax.random.normal(kw2, (n_out, hidden_dim, k), jnp.float32)
    bias2 = bound * jax.random.normal(kb, (n_out,), jnp.float32)

    x = jax.random.normal(kx, (N, input_dim + hidden_dim, L), jnp.float32)
    hid = jax.random.normal(kh, (N, hidden_dim, 1), jnp.float32)

    fwd = jax.jit(weight_share_conv1d,
                  static_argnames=("dilation", "compute_dtype", "out_dtype"))

    ref = _reference(x, hid, weight1, weight2, bias2, dilation)

    # f32 compute path: exact check against the conv reference.
    out_f32 = jax.block_until_ready(
        fwd(x, hid, weight1, weight2, bias2, dilation=dilation,
            compute_dtype=jnp.float32))
    assert out_f32.shape == (N, n_out, L)
    assert jnp.allclose(out_f32, ref, atol=1e-5, rtol=1e-5), "f32 mismatch"

    # default bf16 MXU path (f32 accumulation): loose tolerance.
    out_bf16 = jax.block_until_ready(
        fwd(x, hid, weight1, weight2, bias2, dilation=dilation))
    assert out_bf16.shape == (N, n_out, L)
    assert jnp.allclose(out_bf16, ref, atol=5e-3, rtol=5e-2), "bf16 mismatch"

    print("KERNEL_OK")
</pallas_src>

<mosaic_0001>
module attributes {stable_mosaic.version = 11 : i64} {
  func.func @_conv_mm_kernel(%arg0: i32, %arg1: i32, %arg2: i32, %arg3: memref<128x256xf32, #tpu.memory_space<vmem>>, %arg4: memref<1x256x128xf32, #tpu.memory_space<vmem>>, %arg5: memref<128x1xf32, #tpu.memory_space<vmem>>, %arg6: memref<1x128x128xf32, #tpu.memory_space<vmem>>) attributes {dimension_semantics = [#tpu.dimension_semantics<parallel>, #tpu.dimension_semantics<parallel>, #tpu.dimension_semantics<parallel>], iteration_bounds = array<i64: 2, 1, 1>, scalar_prefetch = 0 : i64, scratch_operands = 0 : i64, tpu.core_type = #tpu.core_type<tc>, window_params = [{transform_indices = @transform_0, window_bounds = array<i64: 128, 256>}, {transform_indices = @transform_1, window_bounds = array<i64: 1, 256, 128>}, {transform_indices = @transform_2, window_bounds = array<i64: 128, 1>}, {transform_indices = @transform_3, window_bounds = array<i64: 1, 128, 128>}]} {
    %c0 = arith.constant 0 : index
    %c0_0 = arith.constant 0 : index
    %0 = vector.load %arg3[%c0, %c0_0] : memref<128x256xf32, #tpu.memory_space<vmem>>, vector<128x256xf32>
    %c0_1 = arith.constant 0 : index
    %c0_2 = arith.constant 0 : index
    %c0_3 = arith.constant 0 : index
    %1 = vector.load %arg4[%c0_1, %c0_2, %c0_3] : memref<1x256x128xf32, #tpu.memory_space<vmem>>, vector<1x256x128xf32>
    %2 = vector.shape_cast %1 : vector<1x256x128xf32> to vector<256x128xf32>
    %cst = arith.constant dense<0.000000e+00> : vector<128x128xf32>
    %3 = tpu.matmul %0, %2, %cst {dimension_numbers = #tpu.dot_dimension_numbers<[1], [0], [0], [1], [0, 0, 1, 1], [], []>} : vector<128x256xf32>, vector<256x128xf32>, vector<128x128xf32> -> vector<128x128xf32>
    %c0_4 = arith.constant 0 : index
    %c0_5 = arith.constant 0 : index
    %4 = vector.load %arg5[%c0_4, %c0_5] : memref<128x1xf32, #tpu.memory_space<vmem>>, vector<128x1xf32>
    %5 = vector.broadcast %4 : vector<128x1xf32> to vector<128x128xf32>
    %6 = arith.addf %3, %5 : vector<128x128xf32>
    %c0_6 = arith.constant 0 : index
    %c0_7 = arith.constant 0 : index
    %c0_8 = arith.constant 0 : index
    %7 = vector.load %arg6[%c0_6, %c0_7, %c0_8] : memref<1x128x128xf32, #tpu.memory_space<vmem>>, vector<1x128x128xf32>
    %8 = vector.shape_cast %7 : vector<1x128x128xf32> to vector<128x128xf32>
    %9 = vector.shape_cast %6 : vector<128x128xf32> to vector<1x128x128xf32>
    tpu.vector_store %arg6[%c0_6, %c0_7, %c0_8], %9 {strides = array<i32>} : memref<1x128x128xf32, #tpu.memory_space<vmem>>, vector<1x128x128xf32>,
    return
  }
  func.func @transform_0(%arg0: i32, %arg1: i32, %arg2: i32) -> (i32, i32) {
    %c0_i32 = arith.constant 0 : i32
    %c0_i32_0 = arith.constant 0 : i32
    return %arg1, %c0_i32 : i32, i32
  }
  func.func @transform_1(%arg0: i32, %arg1: i32, %arg2: i32) -> (i32, i32, i32) {
    %c0_i32 = arith.constant 0 : i32
    %c0_i32_0 = arith.constant 0 : i32
    return %arg0, %c0_i32, %arg2 : i32, i32, i32
  }
  func.func @transform_2(%arg0: i32, %arg1: i32, %arg2: i32) -> (i32, i32) {
    %c0_i32 = arith.constant 0 : i32
    %c0_i32_0 = arith.constant 0 : i32
    return %arg1, %c0_i32 : i32, i32
  }
  func.func @transform_3(%arg0: i32, %arg1: i32, %arg2: i32) -> (i32, i32, i32) {
    %c0_i32 = arith.constant 0 : i32
    return %arg0, %arg1, %arg2 : i32, i32, i32
  }
}

</mosaic_0001>

<llo_original>
// kernel: weight_share_conv1d.1
$region0: #{weight_share_conv1d.1}
  #allocation0 [shape = 'u32[]', space=smem, size = 0x4, offset = 0x4, fixed_abs, tag = 'smem constant byte address 0x4 - core index']
  #allocation1 [shape = 'u32[72,128]{1,0:T(1,128)}', space=vmem, size = 0x9000, scoped, tag = 'internal scratch']
  %s0 = inlined_call_operand.vmem [shape: f32[128,256], index: 0, kind: input, shape index: {}]
  %s1 = inlined_call_operand.vmem [shape: f32[2,256,128], index: 1, kind: input, shape index: {}]
  %s2 = inlined_call_operand.vmem [shape: f32[128,1], index: 2, kind: input, shape index: {}]
  %s3 = inlined_call_operand.vmem [shape: f32[2,128,128], index: 3, kind: output, shape index: {}]
  %s4 = sld [smem:[#allocation0]]
  $region45: #{weight_share_conv1d.1} parent=0
    _
  %s6 = ssub.s32 1, %s4
  %s7 = scalar_select 0, %s6, %s4
  loop: start=0, step=1, limit=4
  $region2: #{weight_share_conv1d.1} parent=0 // loop_pre_header
    _
  $region3: #{weight_share_conv1d.1} parent=0 // loop_header
    %s9 = sphi 0, %s13
    %p10 = scmp.ge.s32.totalorder %s9, 4
    %s16 = sphi 0, %s35
    %s17 = sphi 0, %s31
    %s18 = sphi 0, %s27
    %s19 = sphi 0, %s16
    %s20 = sphi 0, %s17
    %s21 = sphi 0, %s18
    %s22 = sphi 0, %s19
    %s23 = sphi 0, %s20
    %s24 = sphi 0, %s21
    %s38 = sphi 0, %s40
    %s41 = sphi 0, %s38
    %s42 = sphi 0, %s41
    %s58 = sphi 0, %s42
    %s66 = sphi 0, %s68
    %s69 = sphi 0, %s66
    %s70 = sphi 0, %s69
    %s86 = sphi 0, %s70
    %s92 = sphi 0, %s94
    %s95 = sphi 0, %s92
    %s96 = sphi 0, %s95
    %s112 = sphi 0, %s96
    %s122 = sphi 0, %s124
    %s125 = sphi 0, %s122
    %s126 = sphi 0, %s125
    %s142 = sphi 0, %s126
  $region4: #{weight_share_conv1d.1} parent=0 // loop_header_branch
    %12 = sbr.rel (%p10) target = $region8
  $region5: #{weight_share_conv1d.1} parent=0 // loop_body
    %s14 = ssub.s32 %s9, 1
    %s15 = ssub.s32 %s9, 2
    %s25 = sadd.s32 1, %s18
    %p26 = scmp.ge.s32.totalorder %s25, 1
    %s27 = scalar_select %p26, 0, %s25
    %s28 = sadd.s32 1, %s17
    %s29 = scalar_select %p26, %s28, %s17
    %p30 = scmp.ge.s32.totalorder %s29, 1
    %s31 = scalar_select %p30, 0, %s29
    %s32 = sadd.s32 1, %s16
    %s33 = scalar_select %p30, %s32, %s16
    %p34 = scmp.ge.s32.totalorder %s33, 2
    %s35 = scalar_select %p34, 0, %s33
    %s36 = ssub.s32 %s17, %s31
    %p37 = scmp.eq.s32.totalorder %s36, 0
    %s39 = sadd.s32 %s38, 1
    %s40 = scalar_select %p37, %s38, %s39
    %p43 = pneg %p37
    %p44 = scmp.eq.s32.totalorder %s9, 1
    %p45 = por %p43, %p44
    %p46 = scmp.ne.s32.totalorder %s38, %s41
    %p47 = scmp.eq.s32.totalorder %s9, 0
    %p48 = por %p46, %p47
    %p49 = scmp.ne.s32.totalorder %s38, %s41
    %p50 = scmp.eq.s32.totalorder %s14, 1
    %p51 = por %p49, %p50
    %p52 = scmp.ne.s32.totalorder %s41, %s42
    %p53 = scmp.eq.s32.totalorder %s14, 0
    %p54 = por %p52, %p53
    %p55 = scmp.ne.s32.totalorder %s41, %s42
    %p56 = scmp.eq.s32.totalorder %s15, 1
    %p57 = por %p55, %p56
    %p59 = scmp.ne.s32.totalorder %s42, %s58
    %p60 = scmp.eq.s32.totalorder %s15, 0
    %p61 = por %p59, %p60
    %s62 = ssub.s32 %s16, %s35
    %s63 = ssub.s32 %s18, %s27
    %s64 = sor.u32 %s62, %s63
    %p65 = scmp.eq.s32.totalorder %s64, 0
    %s67 = sadd.s32 %s66, 1
    %s68 = scalar_select %p65, %s66, %s67
    %p71 = pneg %p65
    %p72 = scmp.eq.s32.totalorder %s9, 1
    %p73 = por %p71, %p72
    %p74 = scmp.ne.s32.totalorder %s66, %s69
    %p75 = scmp.eq.s32.totalorder %s9, 0
    %p76 = por %p74, %p75
    %p77 = scmp.ne.s32.totalorder %s66, %s69
    %p78 = scmp.eq.s32.totalorder %s14, 1
    %p79 = por %p77, %p78
    %p80 = scmp.ne.s32.totalorder %s69, %s70
    %p81 = scmp.eq.s32.totalorder %s14, 0
    %p82 = por %p80, %p81
    %p83 = scmp.ne.s32.totalorder %s69, %s70
    %p84 = scmp.eq.s32.totalorder %s15, 1
    %p85 = por %p83, %p84
    %p87 = scmp.ne.s32.totalorder %s70, %s86
    %p88 = scmp.eq.s32.totalorder %s15, 0
    %p89 = por %p87, %p88
    %s90 = ssub.s32 %s17, %s31
    %p91 = scmp.eq.s32.totalorder %s90, 0
    %s93 = sadd.s32 %s92, 1
    %s94 = scalar_select %p91, %s92, %s93
    %p97 = pneg %p91
    %p98 = scmp.eq.s32.totalorder %s9, 1
    %p99 = por %p97, %p98
    %p100 = scmp.ne.s32.totalorder %s92, %s95
    %p101 = scmp.eq.s32.totalorder %s9, 0
    %p102 = por %p100, %p101
    %p103 = scmp.ne.s32.totalorder %s92, %s95
    %p104 = scmp.eq.s32.totalorder %s14, 1
    %p105 = por %p103, %p104
    %p106 = scmp.ne.s32.totalorder %s95, %s96
    %p107 = scmp.eq.s32.totalorder %s14, 0
    %p108 = por %p106, %p107
    %p109 = scmp.ne.s32.totalorder %s95, %s96
    %p110 = scmp.eq.s32.totalorder %s15, 1
    %p111 = por %p109, %p110
    %p113 = scmp.ne.s32.totalorder %s96, %s112
    %p114 = scmp.eq.s32.totalorder %s15, 0
    %p115 = por %p113, %p114
    %s116 = ssub.s32 %s16, %s35
    %s117 = ssub.s32 %s17, %s31
    %s118 = sor.u32 %s116, %s117
    %s119 = ssub.s32 %s18, %s27
    %s120 = sor.u32 %s118, %s119
    %p121 = scmp.eq.s32.totalorder %s120, 0
    %s123 = sadd.s32 %s122, 1
    %s124 = scalar_select %p121, %s122, %s123
    %p127 = pneg %p121
    %p128 = scmp.eq.s32.totalorder %s9, 1
    %p129 = por %p127, %p128
    %p130 = scmp.ne.s32.totalorder %s122, %s125
    %p131 = scmp.eq.s32.totalorder %s9, 0
    %p132 = por %p130, %p131
    %p133 = scmp.ne.s32.totalorder %s122, %s125
    %p134 = scmp.eq.s32.totalorder %s14, 1
    %p135 = por %p133, %p134
    %p136 = scmp.ne.s32.totalorder %s125, %s126
    %p137 = scmp.eq.s32.totalorder %s14, 0
    %p138 = por %p136, %p137
    %p139 = scmp.ne.s32.totalorder %s125, %s126
    %p140 = scmp.eq.s32.totalorder %s15, 1
    %p141 = por %p139, %p140
    %p143 = scmp.ne.s32.totalorder %s126, %s142
    %p144 = scmp.eq.s32.totalorder %s15, 0
    %p145 = por %p143, %p144
    %p146 = scmp.le.s32.totalorder 1, %s9
    %p147 = scmp.lt.s32.totalorder %s9, 3
    %p148 = pnand %p146, %p147
    %p149 = pneg %p148
    // Predicated region
    $region9: #{weight_share_conv1d.1} parent=5 // pred_check
      _
    $region10: #{weight_share_conv1d.1} parent=5 // pred_check_branch
      %151 = sbr.rel (%p148) target = $region12
    $region11: #{weight_share_conv1d.1} parent=5 // pred_region
      %s152 = ssub.s32 %s9, 1
      // Predicated region
      $region13: #{weight_share_conv1d.1} parent=11 // pred_check
        %p153 = pneg %p54
      $region14: #{weight_share_conv1d.1} parent=11 // pred_check_branch
        %155 = sbr.rel (%p153) target = $region16
      $region15: #{weight_share_conv1d.1} parent=11 // pred_region
        %s156 = smul.u32 16, %s20
        %p157 = scmp.lt.s32.totalorder %s156, 15
        %s158 = scalar_select %p157, %s156, 15
        %s159 = smul.addr %s158, 2
        %s160 = smul.addr %s159, 8
        %s161 = scalar_lea.vmem %s0, %s160
        %s162 = smul.u32 16, %s20
      $region16: #{weight_share_conv1d.1} parent=11 // pred_fallthru
        _
      // Predicated region
      $region17: #{weight_share_conv1d.1} parent=11 // pred_check
        %p163 = pneg %p108
      $region18: #{weight_share_conv1d.1} parent=11 // pred_check_branch
        %165 = sbr.rel (%p163) target = $region20
      $region19: #{weight_share_conv1d.1} parent=11 // pred_region
        %s166 = smul.u32 16, %s20
        %p167 = scmp.lt.s32.totalorder %s166, 15
        %s168 = scalar_select %p167, %s166, 15
        %s169 = smul.addr %s168, 8
        %s170 = scalar_lea.vmem %s2, %s169
        %s171 = smul.u32 16, %s20
      $region20: #{weight_share_conv1d.1} parent=11 // pred_fallthru
        _
    $region12: #{weight_share_conv1d.1} parent=5 // pred_fallthru
      _
    %p172 = scmp.lt.s32.totalorder %s9, 2
    // Predicated region
    $region21: #{weight_share_conv1d.1} parent=5 // pred_check
      %p173 = pneg %p172
    $region22: #{weight_share_conv1d.1} parent=5 // pred_check_branch
      %175 = sbr.rel (%p173) target = $region24
    $region23: #{weight_share_conv1d.1} parent=5 // pred_region
      // Predicated region
      $region25: #{weight_share_conv1d.1} parent=23 // pred_check
        %p176 = pneg %p76
      $region26: #{weight_share_conv1d.1} parent=23 // pred_check_branch
        %178 = sbr.rel (%p176) target = $region28
      $region27: #{weight_share_conv1d.1} parent=23 // pred_region
        %p179 = scmp.lt.s32.totalorder %s16, 1
        %s180 = scalar_select %p179, %s16, 1
        %p181 = scmp.lt.s32.totalorder %s18, 0
        %s182 = scalar_select %p181, %s18, 0
        %s183 = smul.addr %s180, 32
        %s184 = sadd.s32 %s182, %s183
        %s185 = smul.addr %s184, 8
        %s186 = scalar_lea.vmem %s1, %s185
      $region28: #{weight_share_conv1d.1} parent=23 // pred_fallthru
        _
    $region24: #{weight_share_conv1d.1} parent=5 // pred_fallthru
      _
    %p187 = scmp.le.s32.totalorder 1, %s9
    %p188 = scmp.lt.s32.totalorder %s9, 3
    %p189 = pnand %p187, %p188
    %p190 = pneg %p189
    // Predicated region
    $region29: #{weight_share_conv1d.1} parent=5 // pred_check
      _
    $region30: #{weight_share_conv1d.1} parent=5 // pred_check_branch
      %192 = sbr.rel (%p189) target = $region32
    $region31: #{weight_share_conv1d.1} parent=5 // pred_region
      %s193 = ssub.s32 %s9, 1
      %s194 = smul.u32 16, %s20
      %p195 = scmp.lt.s32.totalorder %s194, 15
      %s196 = scalar_select %p195, %s194, 15
      %s197 = smul.addr %s196, 2
      %s198 = smul.addr %s197, 8
      %s199 = scalar_lea.vmem %s0, %s198
      %p200 = pneg %p54
      %p201 = pneg %p51
      %p202 = scmp.lt.s32.totalorder %s19, 1
      %s203 = scalar_select %p202, %s19, 1
      %p204 = scmp.lt.s32.totalorder %s21, 0
      %s205 = scalar_select %p204, %s21, 0
      %s206 = smul.addr %s203, 32
      %s207 = sadd.s32 %s205, %s206
      %s208 = smul.addr %s207, 8
      %s209 = scalar_lea.vmem %s1, %s208
      %p210 = pneg %p82
      %p211 = pneg %p79
      %s212 = smul.u32 16, %s20
      %p213 = scmp.lt.s32.totalorder %s212, 15
      %s214 = scalar_select %p213, %s212, 15
      %s215 = smul.addr %s214, 8
      %s216 = scalar_lea.vmem %s2, %s215
      %p217 = pneg %p108
      %p218 = pneg %p105
      %p219 = pneg %p138
      %p220 = pneg %p135
      %s221 = smul.u32 16, %s20
      %p222 = scmp.lt.s32.totalorder %s19, 1
      %s223 = scalar_select %p222, %s19, 1
      %p224 = scmp.lt.s32.totalorder %s221, 15
      %s225 = scalar_select %p224, %s221, 15
      %p226 = scmp.lt.s32.totalorder %s21, 0
      %s227 = scalar_select %p226, %s21, 0
      %s228 = sadd.s32 %s227, %s225
      %s229 = smul.addr %s223, 16
      %s230 = sadd.s32 %s228, %s229
      %s231 = smul.addr %s230, 8
      %s232 = scalar_lea.vmem %s3, %s231
      %s233 = smul.u32 16, %s20
      %p234 = scmp.lt.s32.totalorder %s233, 15
      %s235 = scalar_select %p234, %s233, 15
      %s236 = smul.addr %s235, 2
      %s237 = smul.addr %s236, 8
      %s238 = scalar_lea.vmem %s0, %s237
      %s239 = smul.u32 16, %s20
      %p240 = scmp.lt.s32.totalorder %s19, 1
      %s241 = scalar_select %p240, %s19, 1
      %p242 = scmp.lt.s32.totalorder %s21, 0
      %s243 = scalar_select %p242, %s21, 0
      %s244 = smul.addr %s241, 32
      %s245 = sadd.s32 %s243, %s244
      %s246 = smul.addr %s245, 8
      %s247 = scalar_lea.vmem %s1, %s246
      %s248 = smul.u32 16, %s20
      %p249 = scmp.lt.s32.totalorder %s248, 15
      %s250 = scalar_select %p249, %s248, 15
      %s251 = smul.addr %s250, 8
      %s252 = scalar_lea.vmem %s2, %s251
      %s253 = smul.u32 16, %s20
      %s254 = smul.u32 16, %s20
      %p255 = scmp.lt.s32.totalorder %s19, 1
      %s256 = scalar_select %p255, %s19, 1
      %p257 = scmp.lt.s32.totalorder %s254, 15
      %s258 = scalar_select %p257, %s254, 15
      %p259 = scmp.lt.s32.totalorder %s21, 0
      %s260 = scalar_select %p259, %s21, 0
      %s261 = sadd.s32 %s260, %s258
      %s262 = smul.addr %s256, 16
      %s263 = sadd.s32 %s261, %s262
      %s264 = smul.addr %s263, 8
      %s265 = scalar_lea.vmem %s3, %s264
      %s266 = smul.u32 16, %s20
      %v267 = vld [vmem:[%s238] sm:$0xff]
      %v268 = vld [vmem:[%s238 + $0x8] sm:$0xff]
      %v269 = vld [vmem:[%s238 + $0x10] sm:$0xff]
      %v270 = vld [vmem:[%s238 + $0x18] sm:$0xff]
      %v271 = vld [vmem:[%s238 + $0x20] sm:$0xff]
      %v272 = vld [vmem:[%s238 + $0x28] sm:$0xff]
      %v273 = vld [vmem:[%s238 + $0x30] sm:$0xff]
      %v274 = vld [vmem:[%s238 + $0x38] sm:$0xff]
      %v275 = vld [vmem:[%s238 + $0x40] sm:$0xff]
      %v276 = vld [vmem:[%s238 + $0x48] sm:$0xff]
      %v277 = vld [vmem:[%s238 + $0x50] sm:$0xff]
      %v278 = vld [vmem:[%s238 + $0x58] sm:$0xff]
      %v279 = vld [vmem:[%s238 + $0x60] sm:$0xff]
      %v280 = vld [vmem:[%s238 + $0x68] sm:$0xff]
      %v281 = vld [vmem:[%s238 + $0x70] sm:$0xff]
      %v282 = vld [vmem:[%s238 + $0x78] sm:$0xff]
      %v283 = vld [vmem:[%s238 + $0x80] sm:$0xff]
      %v284 = vld [vmem:[%s238 + $0x88] sm:$0xff]
      %v285 = vld [vmem:[%s238 + $0x90] sm:$0xff]
      %v286 = vld [vmem:[%s238 + $0x98] sm:$0xff]
      %v287 = vld [vmem:[%s238 + $0xa0] sm:$0xff]
      %v288 = vld [vmem:[%s238 + $0xa8] sm:$0xff]
      %v289 = vld [vmem:[%s238 + $0xb0] sm:$0xff]
      %v290 = vld [vmem:[%s238 + $0xb8] sm:$0xff]
      %v291 = vld [vmem:[%s238 + $0xc0] sm:$0xff]
      %v292 = vld [vmem:[%s238 + $0xc8] sm:$0xff]
      %v293 = vld [vmem:[%s238 + $0xd0] sm:$0xff]
      %v294 = vld [vmem:[%s238 + $0xd8] sm:$0xff]
      %v295 = vld [vmem:[%s238 + $0xe0] sm:$0xff]
      %v296 = vld [vmem:[%s238 + $0xe8] sm:$0xff]
      %v297 = vld [vmem:[%s238 + $0xf0] sm:$0xff]
      %v298 = vld [vmem:[%s238 + $0xf8] sm:$0xff]
      %v299 = vld [vmem:[%s247] sm:$0xff]
      %v300 = vld [vmem:[%s247 + $0x8] sm:$0xff]
      %v301 = vld [vmem:[%s247 + $0x10] sm:$0xff]
      %v302 = vld [vmem:[%s247 + $0x18] sm:$0xff]
      %v303 = vld [vmem:[%s247 + $0x20] sm:$0xff]
      %v304 = vld [vmem:[%s247 + $0x28] sm:$0xff]
      %v305 = vld [vmem:[%s247 + $0x30] sm:$0xff]
      %v306 = vld [vmem:[%s247 + $0x38] sm:$0xff]
      %v307 = vld [vmem:[%s247 + $0x40] sm:$0xff]
      %v308 = vld [vmem:[%s247 + $0x48] sm:$0xff]
      %v309 = vld [vmem:[%s247 + $0x50] sm:$0xff]
      %v310 = vld [vmem:[%s247 + $0x58] sm:$0xff]
      %v311 = vld [vmem:[%s247 + $0x60] sm:$0xff]
      %v312 = vld [vmem:[%s247 + $0x68] sm:$0xff]
      %v313 = vld [vmem:[%s247 + $0x70] sm:$0xff]
      %v314 = vld [vmem:[%s247 + $0x78] sm:$0xff]
      %v315 = vld [vmem:[%s247 + $0x80] sm:$0xff]
      %v316 = vld [vmem:[%s247 + $0x88] sm:$0xff]
      %v317 = vld [vmem:[%s247 + $0x90] sm:$0xff]
      %v318 = vld [vmem:[%s247 + $0x98] sm:$0xff]
      %v319 = vld [vmem:[%s247 + $0xa0] sm:$0xff]
      %v320 = vld [vmem:[%s247 + $0xa8] sm:$0xff]
      %v321 = vld [vmem:[%s247 + $0xb0] sm:$0xff]
      %v322 = vld [vmem:[%s247 + $0xb8] sm:$0xff]
      %v323 = vld [vmem:[%s247 + $0xc0] sm:$0xff]
      %v324 = vld [vmem:[%s247 + $0xc8] sm:$0xff]
      %v325 = vld [vmem:[%s247 + $0xd0] sm:$0xff]
      %v326 = vld [vmem:[%s247 + $0xd8] sm:$0xff]
      %v327 = vld [vmem:[%s247 + $0xe0] sm:$0xff]
      %v328 = vld [vmem:[%s247 + $0xe8] sm:$0xff]
      %v329 = vld [vmem:[%s247 + $0xf0] sm:$0xff]
      %v330 = vld [vmem:[%s247 + $0xf8] sm:$0xff]
      %v331 = vld [vmem:[%s252] sm:$0xff]
      %v332 = vld [vmem:[%s252 + $0x8] sm:$0xff]
      %v333 = vld [vmem:[%s252 + $0x10] sm:$0xff]
      %v334 = vld [vmem:[%s252 + $0x18] sm:$0xff]
      %v335 = vld [vmem:[%s252 + $0x20] sm:$0xff]
      %v336 = vld [vmem:[%s252 + $0x28] sm:$0xff]
      %v337 = vld [vmem:[%s252 + $0x30] sm:$0xff]
      %v338 = vld [vmem:[%s252 + $0x38] sm:$0xff]
      %v339 = vld [vmem:[%s252 + $0x40] sm:$0xff]
      %v340 = vld [vmem:[%s252 + $0x48] sm:$0xff]
      %v341 = vld [vmem:[%s252 + $0x50] sm:$0xff]
      %v342 = vld [vmem:[%s252 + $0x58] sm:$0xff]
      %v343 = vld [vmem:[%s252 + $0x60] sm:$0xff]
      %v344 = vld [vmem:[%s252 + $0x68] sm:$0xff]
      %v345 = vld [vmem:[%s252 + $0x70] sm:$0xff]
      %v346 = vld [vmem:[%s252 + $0x78] sm:$0xff]
      %348 = vset.pattern.permute.xlu0 0
      %349 = vperm.xlu0 %348, %v331
      %v350 = vpop.permute.xlu0 %349
      %353 = vset.pattern.permute.xlu0 0
      %354 = vperm.xlu0 %353, %v332
      %v355 = vpop.permute.xlu0 %354
      %358 = vset.pattern.permute.xlu0 0
      %359 = vperm.xlu0 %358, %v333
      %v360 = vpop.permute.xlu0 %359
      %363 = vset.pattern.permute.xlu0 0
      %364 = vperm.xlu0 %363, %v334
      %v365 = vpop.permute.xlu0 %364
      %368 = vset.pattern.permute.xlu0 0
      %369 = vperm.xlu0 %368, %v335
      %v370 = vpop.permute.xlu0 %369
      %373 = vset.pattern.permute.xlu0 0
      %374 = vperm.xlu0 %373, %v336
      %v375 = vpop.permute.xlu0 %374
      %378 = vset.pattern.permute.xlu0 0
      %379 = vperm.xlu0 %378, %v337
      %v380 = vpop.permute.xlu0 %379
      %383 = vset.pattern.permute.xlu0 0
      %384 = vperm.xlu0 %383, %v338
      %v385 = vpop.permute.xlu0 %384
      %388 = vset.pattern.permute.xlu0 0
      %389 = vperm.xlu0 %388, %v339
      %v390 = vpop.permute.xlu0 %389
      %393 = vset.pattern.permute.xlu0 0
      %394 = vperm.xlu0 %393, %v340
      %v395 = vpop.permute.xlu0 %394
      %398 = vset.pattern.permute.xlu0 0
      %399 = vperm.xlu0 %398, %v341
      %v400 = vpop.permute.xlu0 %399
      %403 = vset.pattern.permute.xlu0 0
      %404 = vperm.xlu0 %403, %v342
      %v405 = vpop.permute.xlu0 %404
      %408 = vset.pattern.permute.xlu0 0
      %409 = vperm.xlu0 %408, %v343
      %v410 = vpop.permute.xlu0 %409
      %413 = vset.pattern.permute.xlu0 0
      %414 = vperm.xlu0 %413, %v344
      %v415 = vpop.permute.xlu0 %414
      %418 = vset.pattern.permute.xlu0 0
      %419 = vperm.xlu0 %418, %v345
      %v420 = vpop.permute.xlu0 %419
      %423 = vset.pattern.permute.xlu0 0
      %424 = vperm.xlu0 %423, %v346
      %v425 = vpop.permute.xlu0 %424
      %427 = vmatpush.msra.mxu0 %v314
      %428 = vmatpush.msra.mxu0 %v313
      %429 = vmatpush.msra.mxu0 %v312
      %430 = vmatpush.msra.mxu0 %v311
      %431 = vmatpush.msra.mxu0 %v310
      %432 = vmatpush.msra.mxu0 %v309
      %433 = vmatpush.msra.mxu0 %v308
      %434 = vmatpush.msra.mxu0 %v307
      %435 = vmatpush.msra.mxu0 %v306
      %436 = vmatpush.msra.mxu0 %v305
      %437 = vmatpush.msra.mxu0 %v304
      %438 = vmatpush.msra.mxu0 %v303
      %439 = vmatpush.msra.mxu0 %v302
      %440 = vmatpush.msra.mxu0 %v301
      %441 = vmatpush.msra.mxu0 %v300
      %442 = vmatpush.msra.mxu0 %v299
      %443 = vmatmul.f32.gmra.mxu0 %v267
      %v444 = vpop.f32.mrf.mxu0
      %v445 = vadd.f32 %v350, %v444
      %446 = vmatmul.f32.gmra.mxu0 %v269
      %v447 = vpop.f32.mrf.mxu0
      %v448 = vadd.f32 %v355, %v447
      %449 = vmatmul.f32.gmra.mxu0 %v271
      %v450 = vpop.f32.mrf.mxu0
      %v451 = vadd.f32 %v360, %v450
      %452 = vmatmul.f32.gmra.mxu0 %v273
      %v453 = vpop.f32.mrf.mxu0
      %v454 = vadd.f32 %v365, %v453
      %455 = vmatmul.f32.gmra.mxu0 %v275
      %v456 = vpop.f32.mrf.mxu0
      %v457 = vadd.f32 %v370, %v456
      %458 = vmatmul.f32.gmra.mxu0 %v277
      %v459 = vpop.f32.mrf.mxu0
      %v460 = vadd.f32 %v375, %v459
      %461 = vmatmul.f32.gmra.mxu0 %v279
      %v462 = vpop.f32.mrf.mxu0
      %v463 = vadd.f32 %v380, %v462
      %464 = vmatmul.f32.gmra.mxu0 %v281
      %v465 = vpop.f32.mrf.mxu0
      %v466 = vadd.f32 %v385, %v465
      %467 = vmatmul.f32.gmra.mxu0 %v283
      %v468 = vpop.f32.mrf.mxu0
      %v469 = vadd.f32 %v390, %v468
      %470 = vmatmul.f32.gmra.mxu0 %v285
      %v471 = vpop.f32.mrf.mxu0
      %v472 = vadd.f32 %v395, %v471
      %473 = vmatmul.f32.gmra.mxu0 %v287
      %v474 = vpop.f32.mrf.mxu0
      %v475 = vadd.f32 %v400, %v474
      %476 = vmatmul.f32.gmra.mxu0 %v289
      %v477 = vpop.f32.mrf.mxu0
      %v478 = vadd.f32 %v405, %v477
      %479 = vmatmul.f32.gmra.mxu0 %v291
      %v480 = vpop.f32.mrf.mxu0
      %v481 = vadd.f32 %v410, %v480
      %482 = vmatmul.f32.gmra.mxu0 %v293
      %v483 = vpop.f32.mrf.mxu0
      %v484 = vadd.f32 %v415, %v483
      %485 = vmatmul.f32.gmra.mxu0 %v295
      %v486 = vpop.f32.mrf.mxu0
      %v487 = vadd.f32 %v420, %v486
      %488 = vmatmul.f32.gmra.mxu0 %v297
      %v489 = vpop.f32.mrf.mxu0
      %v490 = vadd.f32 %v425, %v489
      %491 = vdwg.mxu0
      %492 = vmatpush.msra.mxu0 %v330
      %493 = vmatpush.msra.mxu0 %v329
      %494 = vmatpush.msra.mxu0 %v328
      %495 = vmatpush.msra.mxu0 %v327
      %496 = vmatpush.msra.mxu0 %v326
      %497 = vmatpush.msra.mxu0 %v325
      %498 = vmatpush.msra.mxu0 %v324
      %499 = vmatpush.msra.mxu0 %v323
      %500 = vmatpush.msra.mxu0 %v322
      %501 = vmatpush.msra.mxu0 %v321
      %502 = vmatpush.msra.mxu0 %v320
      %503 = vmatpush.msra.mxu0 %v319
      %504 = vmatpush.msra.mxu0 %v318
      %505 = vmatpush.msra.mxu0 %v317
      %506 = vmatpush.msra.mxu0 %v316
      %507 = vmatpush.msra.mxu0 %v315
      %508 = vmatmul.f32.gmra.mxu0 %v268
      %v509 = vpop.f32.mrf.mxu0
      %v510 = vadd.f32 %v445, %v509
      %511 = vmatmul.f32.gmra.mxu0 %v270
      %v512 = vpop.f32.mrf.mxu0
      %v513 = vadd.f32 %v448, %v512
      %514 = vmatmul.f32.gmra.mxu0 %v272
      %v515 = vpop.f32.mrf.mxu0
      %v516 = vadd.f32 %v451, %v515
      %517 = vmatmul.f32.gmra.mxu0 %v274
      %v518 = vpop.f32.mrf.mxu0
      %v519 = vadd.f32 %v454, %v518
      %520 = vmatmul.f32.gmra.mxu0 %v276
      %v521 = vpop.f32.mrf.mxu0
      %v522 = vadd.f32 %v457, %v521
      %523 = vmatmul.f32.gmra.mxu0 %v278
      %v524 = vpop.f32.mrf.mxu0
      %v525 = vadd.f32 %v460, %v524
      %526 = vmatmul.f32.gmra.mxu0 %v280
      %v527 = vpop.f32.mrf.mxu0
      %v528 = vadd.f32 %v463, %v527
      %529 = vmatmul.f32.gmra.mxu0 %v282
      %v530 = vpop.f32.mrf.mxu0
      %v531 = vadd.f32 %v466, %v530
      %532 = vmatmul.f32.gmra.mxu0 %v284
      %v533 = vpop.f32.mrf.mxu0
      %v534 = vadd.f32 %v469, %v533
      %535 = vmatmul.f32.gmra.mxu0 %v286
      %v536 = vpop.f32.mrf.mxu0
      %v537 = vadd.f32 %v472, %v536
      %538 = vmatmul.f32.gmra.mxu0 %v288
      %v539 = vpop.f32.mrf.mxu0
      %v540 = vadd.f32 %v475, %v539
      %541 = vmatmul.f32.gmra.mxu0 %v290
      %v542 = vpop.f32.mrf.mxu0
      %v543 = vadd.f32 %v478, %v542
      %544 = vmatmul.f32.gmra.mxu0 %v292
      %v545 = vpop.f32.mrf.mxu0
      %v546 = vadd.f32 %v481, %v545
      %547 = vmatmul.f32.gmra.mxu0 %v294
      %v548 = vpop.f32.mrf.mxu0
      %v549 = vadd.f32 %v484, %v548
      %550 = vmatmul.f32.gmra.mxu0 %v296
      %v551 = vpop.f32.mrf.mxu0
      %v552 = vadd.f32 %v487, %v551
      %553 = vmatmul.f32.gmra.mxu0 %v298
      %v554 = vpop.f32.mrf.mxu0
      %v555 = vadd.f32 %v490, %v554
      %556 = vdwg.mxu0
      %557 = vst [vmem:[%s265] sm:$0xff] %v510
      %558 = vst [vmem:[%s265 + $0x8] sm:$0xff] %v513
      %559 = vst [vmem:[%s265 + $0x10] sm:$0xff] %v516
      %560 = vst [vmem:[%s265 + $0x18] sm:$0xff] %v519
      %561 = vst [vmem:[%s265 + $0x20] sm:$0xff] %v522
      %562 = vst [vmem:[%s265 + $0x28] sm:$0xff] %v525
      %563 = vst [vmem:[%s265 + $0x30] sm:$0xff] %v528
      %564 = vst [vmem:[%s265 + $0x38] sm:$0xff] %v531
      %565 = vst [vmem:[%s265 + $0x40] sm:$0xff] %v534
      %566 = vst [vmem:[%s265 + $0x48] sm:$0xff] %v537
      %567 = vst [vmem:[%s265 + $0x50] sm:$0xff] %v540
      %568 = vst [vmem:[%s265 + $0x58] sm:$0xff] %v543
      %569 = vst [vmem:[%s265 + $0x60] sm:$0xff] %v546
      %570 = vst [vmem:[%s265 + $0x68] sm:$0xff] %v549
      %571 = vst [vmem:[%s265 + $0x70] sm:$0xff] %v552
      %572 = vst [vmem:[%s265 + $0x78] sm:$0xff] %v555
      %s573 = smul.u32 16, %s20
      %p574 = scmp.lt.s32.totalorder %s19, 1
      %s575 = scalar_select %p574, %s19, 1
      %p576 = scmp.lt.s32.totalorder %s573, 15
      %s577 = scalar_select %p576, %s573, 15
      %p578 = scmp.lt.s32.totalorder %s21, 0
      %s579 = scalar_select %p578, %s21, 0
      %s580 = sadd.s32 %s579, %s577
      %s581 = smul.addr %s575, 16
      %s582 = sadd.s32 %s580, %s581
      %s583 = smul.addr %s582, 8
      %s584 = scalar_lea.vmem %s3, %s583
      // Predicated region
      $region33: #{weight_share_conv1d.1} parent=31 // pred_check
        %p585 = pneg %p135
      $region34: #{weight_share_conv1d.1} parent=31 // pred_check_branch
        %587 = sbr.rel (%p585) target = $region36
      $region35: #{weight_share_conv1d.1} parent=31 // pred_region
        %s588 = smul.u32 16, %s20
      $region36: #{weight_share_conv1d.1} parent=31 // pred_fallthru
        _
    $region32: #{weight_share_conv1d.1} parent=5 // pred_fallthru
      _
    %p589 = scmp.le.s32.totalorder 2, %s9
    // Predicated region
    $region37: #{weight_share_conv1d.1} parent=5 // pred_check
      %p590 = pneg %p589
    $region38: #{weight_share_conv1d.1} parent=5 // pred_check_branch
      %592 = sbr.rel (%p590) target = $region40
    $region39: #{weight_share_conv1d.1} parent=5 // pred_region
      %s593 = ssub.s32 %s9, 2
      // Predicated region
      $region41: #{weight_share_conv1d.1} parent=39 // pred_check
        %p594 = pneg %p141
      $region42: #{weight_share_conv1d.1} parent=39 // pred_check_branch
        %596 = sbr.rel (%p594) target = $region44
      $region43: #{weight_share_conv1d.1} parent=39 // pred_region
        %s597 = smul.u32 16, %s23
        %p598 = scmp.lt.s32.totalorder %s22, 1
        %s599 = scalar_select %p598, %s22, 1
        %p600 = scmp.lt.s32.totalorder %s597, 15
        %s601 = scalar_select %p600, %s597, 15
        %p602 = scmp.lt.s32.totalorder %s24, 0
        %s603 = scalar_select %p602, %s24, 0
        %s604 = sadd.s32 %s603, %s601
        %s605 = smul.addr %s599, 16
        %s606 = sadd.s32 %s604, %s605
        %s607 = smul.addr %s606, 8
        %s608 = scalar_lea.vmem %s3, %s607
      $region44: #{weight_share_conv1d.1} parent=39 // pred_fallthru
        _
    $region40: #{weight_share_conv1d.1} parent=5 // pred_fallthru
      _
  $region6: #{weight_share_conv1d.1} parent=0 // loop_footer
    %s13 = sadd.s32 1, %s9
  $region7: #{weight_share_conv1d.1} parent=0 // loop_footer_branch
    %8 = sbr.rel target = $region3
  $region8: #{weight_share_conv1d.1} parent=0 // loop_exit
    _

</llo_original>
